<compile_context>
chip_gen: v5e
topology: v5e:2x2
jax: 0.10.0
libtpu: 0.0.40
codegen_flags: <defaults>
</compile_context>

<pallas_src>
import functools

import jax
import jax.numpy as jnp
from jax.experimental import pallas as pl
from jax.experimental.pallas import tpu as pltpu

LEAKY_SLOPE = 0.01   # torch.nn.LeakyReLU default
LANE = 128
SUB = 16             # sublane multiple that is safe for bf16 tiles


def _leaky_relu(x):
    return jnp.where(x > 0, x, LEAKY_SLOPE * x)


def _round_up(x, m):
    return (x + m - 1) // m * m


def _backend_kernel(feat_ref,
                    w1_ref, b1_ref,
                    w2_ref, b2_ref,
                    w3_ref, b3_ref,
                    w4_ref, b4_ref,
                    logits_ref, emb_ref,
                    acc_ref,
                    *, frames_total, frames_padded, frames_per_tile):
    t = pl.program_id(1)

    @pl.when(t == 0)
    def _init():
        acc_ref[...] = jnp.zeros_like(acc_ref)

    x = feat_ref[...]                                     # (tt, d_in_p) bf16

    # bf16 MXU operands, f32 accumulation, f32 bias add.
    h = _leaky_relu(
        jnp.dot(x, w1_ref[...], preferred_element_type=jnp.float32)
        + b1_ref[...])
    h = _leaky_relu(
        jnp.dot(h.astype(jnp.bfloat16), w2_ref[...],
                preferred_element_type=jnp.float32)
        + b2_ref[...])
    h = _leaky_relu(
        jnp.dot(h.astype(jnp.bfloat16), w3_ref[...],
                preferred_element_type=jnp.float32)
        + b3_ref[...])
    # h: (tt, d_out_p) f32

    # Frame mask + frame-sum folded into one tiny MXU mat-vec.  Rows that are
    # zero-padded frames (only possible in the last tile) get weight 0; valid
    # rows get weight 1.  Padded frames in HBM are real zeros (wrapper pad),
    # so no undefined edge-block data ever reaches the accumulator.
    if frames_padded != frames_total:
        col = jax.lax.broadcasted_iota(jnp.int32, (1, frames_per_tile), 1)
        valid = (col + t * frames_per_tile) < frames_total
        row_vec = jnp.where(valid, 1.0, 0.0).astype(jnp.float32)
    else:
        row_vec = jnp.ones((1, frames_per_tile), jnp.float32)

    # Keep the frame-sum in f32 (negligible cost for a (1,tt)x(tt,D) mat-vec)
    # so the accumulator stays full precision, per the review note.
    acc_ref[...] += jnp.dot(row_vec, h, preferred_element_type=jnp.float32)

    @pl.when(t == pl.num_programs(1) - 1)
    def _finalize():
        emb = acc_ref[...] * jnp.float32(1.0 / frames_total)    # (1, d_out_p)
        emb_ref[...] = emb.astype(emb_ref.dtype)
        logits = (jnp.dot(emb.astype(jnp.bfloat16), w4_ref[...],
                          preferred_element_type=jnp.float32)
                  + b4_ref[...])
        logits_ref[...] = logits.astype(logits_ref.dtype)


def backend_forward(feat, params, *, frame_tile=512, feat_buffers=2,
                    single_buffer_weights=False):
    """feat: (B, T, D_in) f32.  params: weights stored (in, out), biases (1, out)."""
    B, T, D_in = feat.shape
    D_out = params["w3"].shape[1]
    n_cls = params["w4"].shape[1]

    d_in_p = _round_up(D_in, LANE)
    d_out_p = _round_up(D_out, LANE)
    n_cls_p = _round_up(n_cls, LANE)

    # --- frame tile sizing against an explicit VMEM budget --------------------
    # Budget of ~40 MiB fits v7x's 64 MiB with headroom and is trivially fine
    # on v5e/v6e's 128 MiB; larger tiles amortize the ~0.35us per-step cost.
    weight_buf = 1 if single_buffer_weights else 2
    feat_buf = max(2, feat_buffers)

    def step_bytes(tt_):
        w_bytes = 2 * (2 * d_in_p * d_in_p + d_in_p * d_out_p
                       + d_out_p * n_cls_p) * weight_buf          # bf16 weights
        b_bytes = 4 * (2 * d_in_p + d_out_p + n_cls_p) * 2        # f32 biases
        feat_bytes = 2 * tt_ * d_in_p * feat_buf                  # bf16 feat tiles
        inter = 4 * tt_ * (2 * d_in_p + d_out_p)                  # f32 h temporaries
        out_bytes = 4 * (d_out_p + n_cls_p) * 2 + 4 * d_out_p     # outputs + acc
        return w_bytes + b_bytes + feat_bytes + inter + out_bytes

    tt = min(_round_up(T, SUB), _round_up(frame_tile, SUB))
    budget = 40 << 20
    while tt > SUB and step_bytes(tt) > budget:
        tt = _round_up(tt // 2, SUB)

    T_pad = _round_up(T, tt)
    n_t = T_pad // tt

    # --- layout plumbing in the wrapper ---------------------------------------
    # Zero padding is exact: padded hidden columns stay 0 through LeakyReLU
    # (bias pad = 0) and padded contraction rows contribute 0 to the matmuls.
    # Padded frames are masked by the 0-weight rows of the frame-sum mat-vec.
    bf16 = jnp.bfloat16
    feat_p = jnp.pad(
        feat, ((0, 0), (0, T_pad - T), (0, d_in_p - D_in))).astype(bf16)
    w1 = jnp.pad(params["w1"], ((0, d_in_p - D_in), (0, d_in_p - D_in))).astype(bf16)
    b1 = jnp.pad(params["b1"], ((0, 0), (0, d_in_p - D_in)))
    w2 = jnp.pad(params["w2"], ((0, d_in_p - D_in), (0, d_in_p - D_in))).astype(bf16)
    b2 = jnp.pad(params["b2"], ((0, 0), (0, d_in_p - D_in)))
    w3 = jnp.pad(params["w3"], ((0, d_in_p - D_in), (0, d_out_p - D_out))).astype(bf16)
    b3 = jnp.pad(params["b3"], ((0, 0), (0, d_out_p - D_out)))
    w4 = jnp.pad(params["w4"], ((0, d_out_p - D_out), (0, n_cls_p - n_cls))).astype(bf16)
    b4 = jnp.pad(params["b4"], ((0, 0), (0, n_cls_p - n_cls)))

    # --- BlockSpecs ------------------------------------------------------------
    def _resident_spec(shape):
        # Constant block index -> fetched once, never re-DMA'd.  Optionally
        # single-buffered to save VMEM (v7x).
        if single_buffer_weights:
            return pl.BlockSpec(shape, lambda b, t: (0,) * len(shape),
                                pipeline_mode=pl.Buffered(1))
        return pl.BlockSpec(shape, lambda b, t: (0,) * len(shape))

    if feat_buffers != 2:
        feat_spec = pl.BlockSpec((None, tt, d_in_p), lambda b, t: (b, t, 0),
                                 pipeline_mode=pl.Buffered(feat_buffers))
    else:
        feat_spec = pl.BlockSpec((None, tt, d_in_p), lambda b, t: (b, t, 0))

    # --- cost estimate + VMEM limit --------------------------------------------
    flops = int(B * T_pad * (4 * d_in_p * d_in_p + 2 * d_in_p * d_out_p)
                + B * T_pad * 2 * d_out_p
                + B * 2 * d_out_p * n_cls_p)
    bytes_accessed = int(
        feat_p.size * 2
        + (2 * d_in_p * d_in_p + d_in_p * d_out_p + d_out_p * n_cls_p) * 2
        + (2 * d_in_p + d_out_p + n_cls_p) * 4
        + B * (n_cls_p + d_out_p) * 4)
    cost = pl.CostEstimate(flops=flops, transcendentals=0,
                           bytes_accessed=bytes_accessed)
    vmem_limit = int(max(32 << 20,
                         min(int(1.5 * step_bytes(tt)) + (1 << 20), 60 << 20)))

    kernel = functools.partial(_backend_kernel, frames_total=T,
                               frames_padded=T_pad, frames_per_tile=tt)

    logits_p, emb_p = pl.pallas_call(
        kernel,
        out_shape=(
            jax.ShapeDtypeStruct((B, 1, n_cls_p), jnp.float32),
            jax.ShapeDtypeStruct((B, 1, d_out_p), jnp.float32),
        ),
        grid=(B, n_t),
        in_specs=[
            feat_spec,                                   # streamed frame tile
            _resident_spec((d_in_p, d_in_p)),            # w1 (bf16)
            _resident_spec((1, d_in_p)),                 # b1 (f32)
            _resident_spec((d_in_p, d_in_p)),            # w2 (bf16)
            _resident_spec((1, d_in_p)),                 # b2 (f32)
            _resident_spec((d_in_p, d_out_p)),           # w3 (bf16)
            _resident_spec((1, d_out_p)),                # b3 (f32)
            _resident_spec((d_out_p, n_cls_p)),          # w4 (bf16)
            _resident_spec((1, n_cls_p)),                # b4 (f32)
        ],
        out_specs=(
            pl.BlockSpec((None, 1, n_cls_p), lambda b, t: (b, 0, 0)),
            pl.BlockSpec((None, 1, d_out_p), lambda b, t: (b, 0, 0)),
        ),
        scratch_shapes=[pltpu.VMEM((1, d_out_p), jnp.float32)],
        compiler_params=pltpu.CompilerParams(
            dimension_semantics=("parallel", "arbitrary"),
            vmem_limit_bytes=vmem_limit),
        cost_estimate=cost,
    )(feat_p, w1, b1, w2, b2, w3, b3, w4, b4)

    # Slice off the lane padding outside the kernel.
    return logits_p[:, 0, :n_cls], emb_p[:, 0, :D_out]


def init_params(key, input_dim, out_dim, num_classes):
    ks = jax.random.split(key, 8)

    def lin(kw, kb, fan_in, fan_out):
        # Deterministic small-scale init; weight stored as (in, out).
        w = (jax.random.normal(kw, (fan_in, fan_out), jnp.float32)
             / jnp.sqrt(jnp.float32(fan_in)))
        b = 0.01 * jax.random.normal(kb, (1, fan_out), jnp.float32)
        return w, b

    w1, b1 = lin(ks[0], ks[1], input_dim, input_dim)
    w2, b2 = lin(ks[2], ks[3], input_dim, input_dim)
    w3, b3 = lin(ks[4], ks[5], input_dim, out_dim)
    w4, b4 = lin(ks[6], ks[7], out_dim, num_classes)
    return dict(w1=w1, b1=b1, w2=w2, b2=b2, w3=w3, b3=b3, w4=w4, b4=b4)


def backend_reference(feat, p, matmul_dtype=jnp.float32):
    """Pure-JAX reference.  matmul_dtype=bfloat16 mirrors the kernel numerics."""
    def lin(a, w, b):
        return jnp.dot(a.astype(matmul_dtype), w.astype(matmul_dtype),
                       preferred_element_type=jnp.float32) + b

    h = jax.nn.leaky_relu(lin(feat, p["w1"], p["b1"]), LEAKY_SLOPE)
    h = jax.nn.leaky_relu(lin(h, p["w2"], p["b2"]), LEAKY_SLOPE)
    h = jax.nn.leaky_relu(lin(h, p["w3"], p["b3"]), LEAKY_SLOPE)
    emb = h.mean(axis=1)
    logits = lin(emb, p["w4"], p["b4"])
    return logits, emb


if __name__ == "__main__":
    key = jax.random.PRNGKey(0)
    k_feat, k_par = jax.random.split(key)

    B, T = 2, 8              # batch, frame_num
    input_dim = 32           # feat_feat_dim
    out_dim = 16             # emb dim
    num_classes = 2

    feat = jax.random.normal(k_feat, (B, T, input_dim), jnp.float32)
    params = init_params(k_par, input_dim, out_dim, num_classes)

    logits, emb = backend_forward(feat, params)
    jax.block_until_ready((logits, emb))

    assert logits.shape == (B, num_classes) and emb.shape == (B, out_dim)

    # Tight check against a reference with matched bf16 matmul operands.
    ref_logits_m, ref_emb_m = backend_reference(feat, params,
                                                matmul_dtype=jnp.bfloat16)
    assert jnp.allclose(logits, ref_logits_m, atol=2e-3, rtol=2e-3)
    assert jnp.allclose(emb, ref_emb_m, atol=2e-3, rtol=2e-3)

    # Looser check against the full-f32 module semantics (bf16 operand error).
    ref_logits, ref_emb = backend_reference(feat, params,
                                            matmul_dtype=jnp.float32)
    assert jnp.allclose(logits, ref_logits, atol=5e-2, rtol=5e-2)
    assert jnp.allclose(emb, ref_emb, atol=5e-2, rtol=5e-2)

    print("KERNEL_OK")
</pallas_src>

<mosaic_0001>
module attributes {stable_mosaic.version = 11 : i64} {
  func.func @_backend_kernel(%arg0: i32, %arg1: i32, %arg2: memref<1x16x128xbf16, #tpu.memory_space<vmem>>, %arg3: memref<128x128xbf16, #tpu.memory_space<vmem>>, %arg4: memref<1x128xf32, #tpu.memory_space<vmem>>, %arg5: memref<128x128xbf16, #tpu.memory_space<vmem>>, %arg6: memref<1x128xf32, #tpu.memory_space<vmem>>, %arg7: memref<128x128xbf16, #tpu.memory_space<vmem>>, %arg8: memref<1x128xf32, #tpu.memory_space<vmem>>, %arg9: memref<128x128xbf16, #tpu.memory_space<vmem>>, %arg10: memref<1x128xf32, #tpu.memory_space<vmem>>, %arg11: memref<1x1x128xf32, #tpu.memory_space<vmem>>, %arg12: memref<1x1x128xf32, #tpu.memory_space<vmem>>, %arg13: memref<1x128xf32, #tpu.memory_space<vmem>>) attributes {dimension_semantics = [#tpu.dimension_semantics<parallel>, #tpu.dimension_semantics<arbitrary>], iteration_bounds = array<i64: 2, 1>, scalar_prefetch = 0 : i64, scratch_operands = 1 : i64, tpu.core_type = #tpu.core_type<tc>, window_params = [{transform_indices = @transform_0, window_bounds = array<i64: 1, 16, 128>}, {pipeline_mode = #tpu.pipeline_mode<synchronous>, transform_indices = @transform_1, window_bounds = array<i64: 128, 128>}, {pipeline_mode = #tpu.pipeline_mode<synchronous>, transform_indices = @transform_2, window_bounds = array<i64: 1, 128>}, {pipeline_mode = #tpu.pipeline_mode<synchronous>, transform_indices = @transform_3, window_bounds = array<i64: 128, 128>}, {pipeline_mode = #tpu.pipeline_mode<synchronous>, transform_indices = @transform_4, window_bounds = array<i64: 1, 128>}, {pipeline_mode = #tpu.pipeline_mode<synchronous>, transform_indices = @transform_5, window_bounds = array<i64: 128, 128>}, {pipeline_mode = #tpu.pipeline_mode<synchronous>, transform_indices = @transform_6, window_bounds = array<i64: 1, 128>}, {pipeline_mode = #tpu.pipeline_mode<synchronous>, transform_indices = @transform_7, window_bounds = array<i64: 128, 128>}, {pipeline_mode = #tpu.pipeline_mode<synchronous>, transform_indices = @transform_8, window_bounds = array<i64: 1, 128>}, {transform_indices = @transform_9, window_bounds = array<i64: 1, 1, 128>}, {transform_indices = @transform_10, window_bounds = array<i64: 1, 1, 128>}]} {
    %c0_i32 = arith.constant 0 : i32
    %0 = arith.cmpi eq, %arg1, %c0_i32 : i32
    %1 = arith.extui %0 : i1 to i32
    %c0_i32_0 = arith.constant 0 : i32
    %2 = arith.cmpi ne, %1, %c0_i32_0 : i32
    scf.if %2 {
      %cst_32 = arith.constant 0.000000e+00 : f32
      %53 = vector.broadcast %cst_32 : f32 to vector<1x128xf32>
      %c0_33 = arith.constant 0 : index
      %c0_34 = arith.constant 0 : index
      %54 = vector.load %arg13[%c0_33, %c0_34] : memref<1x128xf32, #tpu.memory_space<vmem>>, vector<1x128xf32>
      tpu.vector_store %arg13[%c0_33, %c0_34], %53 {strides = array<i32>} : memref<1x128xf32, #tpu.memory_space<vmem>>, vector<1x128xf32>,
    } else {
    }
    %c0 = arith.constant 0 : index
    %c0_1 = arith.constant 0 : index
    %c0_2 = arith.constant 0 : index
    %3 = vector.load %arg2[%c0, %c0_1, %c0_2] : memref<1x16x128xbf16, #tpu.memory_space<vmem>>, vector<1x16x128xbf16>
    %4 = vector.shape_cast %3 : vector<1x16x128xbf16> to vector<16x128xbf16>
    %c0_3 = arith.constant 0 : index
    %c0_4 = arith.constant 0 : index
    %5 = vector.load %arg3[%c0_3, %c0_4] : memref<128x128xbf16, #tpu.memory_space<vmem>>, vector<128x128xbf16>
    %cst = arith.constant dense<0.000000e+00> : vector<16x128xf32>
    %6 = tpu.matmul %4, %5, %cst {dimension_numbers = #tpu.dot_dimension_numbers<[1], [0], [0], [1], [0, 0, 1, 1], [], []>} : vector<16x128xbf16>, vector<128x128xbf16>, vector<16x128xf32> -> vector<16x128xf32>
    %c0_5 = arith.constant 0 : index
    %c0_6 = arith.constant 0 : index
    %7 = vector.load %arg4[%c0_5, %c0_6] : memref<1x128xf32, #tpu.memory_space<vmem>>, vector<1x128xf32>
    %8 = vector.broadcast %7 : vector<1x128xf32> to vector<16x128xf32>
    %9 = arith.addf %6, %8 : vector<16x128xf32>
    %cst_7 = arith.constant 0.000000e+00 : f32
    %10 = vector.broadcast %cst_7 : f32 to vector<16x128xf32>
    %11 = arith.cmpf ogt, %9, %10 : vector<16x128xf32>
    %cst_8 = arith.constant 0.00999999977 : f32
    %12 = vector.broadcast %cst_8 : f32 to vector<16x128xf32>
    %13 = arith.mulf %12, %9 : vector<16x128xf32>
    %14 = arith.select %11, %9, %13 : vector<16x128xi1>, vector<16x128xf32>
    %15 = arith.truncf %14 : vector<16x128xf32> to vector<16x128xbf16>
    %c0_9 = arith.constant 0 : index
    %c0_10 = arith.constant 0 : index
    %16 = vector.load %arg5[%c0_9, %c0_10] : memref<128x128xbf16, #tpu.memory_space<vmem>>, vector<128x128xbf16>
    %cst_11 = arith.constant dense<0.000000e+00> : vector<16x128xf32>
    %17 = tpu.matmul %15, %16, %cst_11 {dimension_numbers = #tpu.dot_dimension_numbers<[1], [0], [0], [1], [0, 0, 1, 1], [], []>} : vector<16x128xbf16>, vector<128x128xbf16>, vector<16x128xf32> -> vector<16x128xf32>
    %c0_12 = arith.constant 0 : index
    %c0_13 = arith.constant 0 : index
    %18 = vector.load %arg6[%c0_12, %c0_13] : memref<1x128xf32, #tpu.memory_space<vmem>>, vector<1x128xf32>
    %19 = vector.broadcast %18 : vector<1x128xf32> to vector<16x128xf32>
    %20 = arith.addf %17, %19 : vector<16x128xf32>
    %cst_14 = arith.constant 0.000000e+00 : f32
    %21 = vector.broadcast %cst_14 : f32 to vector<16x128xf32>
    %22 = arith.cmpf ogt, %20, %21 : vector<16x128xf32>
    %cst_15 = arith.constant 0.00999999977 : f32
    %23 = vector.broadcast %cst_15 : f32 to vector<16x128xf32>
    %24 = arith.mulf %23, %20 : vector<16x128xf32>
    %25 = arith.select %22, %20, %24 : vector<16x128xi1>, vector<16x128xf32>
    %26 = arith.truncf %25 : vector<16x128xf32> to vector<16x128xbf16>
    %c0_16 = arith.constant 0 : index
    %c0_17 = arith.constant 0 : index
    %27 = vector.load %arg7[%c0_16, %c0_17] : memref<128x128xbf16, #tpu.memory_space<vmem>>, vector<128x128xbf16>
    %cst_18 = arith.constant dense<0.000000e+00> : vector<16x128xf32>
    %28 = tpu.matmul %26, %27, %cst_18 {dimension_numbers = #tpu.dot_dimension_numbers<[1], [0], [0], [1], [0, 0, 1, 1], [], []>} : vector<16x128xbf16>, vector<128x128xbf16>, vector<16x128xf32> -> vector<16x128xf32>
    %c0_19 = arith.constant 0 : index
    %c0_20 = arith.constant 0 : index
    %29 = vector.load %arg8[%c0_19, %c0_20] : memref<1x128xf32, #tpu.memory_space<vmem>>, vector<1x128xf32>
    %30 = vector.broadcast %29 : vector<1x128xf32> to vector<16x128xf32>
    %31 = arith.addf %28, %30 : vector<16x128xf32>
    %cst_21 = arith.constant 0.000000e+00 : f32
    %32 = vector.broadcast %cst_21 : f32 to vector<16x128xf32>
    %33 = arith.cmpf ogt, %31, %32 : vector<16x128xf32>
    %cst_22 = arith.constant 0.00999999977 : f32
    %34 = vector.broadcast %cst_22 : f32 to vector<16x128xf32>
    %35 = arith.mulf %34, %31 : vector<16x128xf32>
    %36 = arith.select %33, %31, %35 : vector<16x128xi1>, vector<16x128xf32>
    %37 = tpu.iota {dimensions = array<i32: 1>} : vector<1x16xi32>
    %c16_i32 = arith.constant 16 : i32
    %38 = arith.muli %arg1, %c16_i32 : i32
    %39 = vector.broadcast %38 : i32 to vector<1x16xi32>
    %40 = arith.addi %37, %39 : vector<1x16xi32>
    %c8_i32 = arith.constant 8 : i32
    %41 = vector.broadcast %c8_i32 : i32 to vector<1x16xi32>
    %42 = arith.cmpi slt, %40, %41 : vector<1x16xi32>
    %cst_23 = arith.constant 1.000000e+00 : f32
    %cst_24 = arith.constant 0.000000e+00 : f32
    %43 = vector.broadcast %cst_23 : f32 to vector<1x16xf32>
    %44 = vector.broadcast %cst_24 : f32 to vector<1x16xf32>
    %45 = arith.select %42, %43, %44 : vector<1x16xi1>, vector<1x16xf32>
    %c0_25 = arith.constant 0 : index
    %c0_26 = arith.constant 0 : index
    %46 = vector.load %arg13[%c0_25, %c0_26] : memref<1x128xf32, #tpu.memory_space<vmem>>, vector<1x128xf32>
    %cst_27 = arith.constant dense<0.000000e+00> : vector<1x128xf32>
    %47 = tpu.matmul %45, %36, %cst_27 {dimension_numbers = #tpu.dot_dimension_numbers<[1], [0], [0], [1], [0, 0, 1, 1], [], []>} : vector<1x16xf32>, vector<16x128xf32>, vector<1x128xf32> -> vector<1x128xf32>
    %48 = arith.addf %46, %47 : vector<1x128xf32>
    %c0_28 = arith.constant 0 : index
    %c0_29 = arith.constant 0 : index
    %49 = vector.load %arg13[%c0_28, %c0_29] : memref<1x128xf32, #tpu.memory_space<vmem>>, vector<1x128xf32>
    tpu.vector_store %arg13[%c0_28, %c0_29], %48 {strides = array<i32>} : memref<1x128xf32, #tpu.memory_space<vmem>>, vector<1x128xf32>,
    %c0_i32_30 = arith.constant 0 : i32
    %50 = arith.cmpi eq, %arg1, %c0_i32_30 : i32
    %51 = arith.extui %50 : i1 to i32
    %c0_i32_31 = arith.constant 0 : i32
    %52 = arith.cmpi ne, %51, %c0_i32_31 : i32
    scf.if %52 {
      %c0_32 = arith.constant 0 : index
      %c0_33 = arith.constant 0 : index
      %53 = vector.load %arg13[%c0_32, %c0_33] : memref<1x128xf32, #tpu.memory_space<vmem>>, vector<1x128xf32>
      %cst_34 = arith.constant 1.250000e-01 : f32
      %54 = vector.broadcast %cst_34 : f32 to vector<1x128xf32>
      %55 = arith.mulf %53, %54 : vector<1x128xf32>
      %c0_35 = arith.constant 0 : index
      %c0_36 = arith.constant 0 : index
      %c0_37 = arith.constant 0 : index
      %56 = vector.load %arg12[%c0_35, %c0_36, %c0_37] : memref<1x1x128xf32, #tpu.memory_space<vmem>>, vector<1x1x128xf32>
      %57 = vector.shape_cast %56 : vector<1x1x128xf32> to vector<1x128xf32>
      %58 = vector.shape_cast %55 : vector<1x128xf32> to vector<1x1x128xf32>
      tpu.vector_store %arg12[%c0_35, %c0_36, %c0_37], %58 {strides = array<i32>} : memref<1x1x128xf32, #tpu.memory_space<vmem>>, vector<1x1x128xf32>,
      %59 = arith.truncf %55 : vector<1x128xf32> to vector<1x128xbf16>
      %c0_38 = arith.constant 0 : index
      %c0_39 = arith.constant 0 : index
      %60 = vector.load %arg9[%c0_38, %c0_39] : memref<128x128xbf16, #tpu.memory_space<vmem>>, vector<128x128xbf16>
      %cst_40 = arith.constant dense<0.000000e+00> : vector<1x128xf32>
      %61 = tpu.matmul %59, %60, %cst_40 {dimension_numbers = #tpu.dot_dimension_numbers<[1], [0], [0], [1], [0, 0, 1, 1], [], []>} : vector<1x128xbf16>, vector<128x128xbf16>, vector<1x128xf32> -> vector<1x128xf32>
      %c0_41 = arith.constant 0 : index
      %c0_42 = arith.constant 0 : index
      %62 = vector.load %arg10[%c0_41, %c0_42] : memref<1x128xf32, #tpu.memory_space<vmem>>, vector<1x128xf32>
      %63 = arith.addf %61, %62 : vector<1x128xf32>
      %c0_43 = arith.constant 0 : index
      %c0_44 = arith.constant 0 : index
      %c0_45 = arith.constant 0 : index
      %64 = vector.load %arg11[%c0_43, %c0_44, %c0_45] : memref<1x1x128xf32, #tpu.memory_space<vmem>>, vector<1x1x128xf32>
      %65 = vector.shape_cast %64 : vector<1x1x128xf32> to vector<1x128xf32>
      %66 = vector.shape_cast %63 : vector<1x128xf32> to vector<1x1x128xf32>
      tpu.vector_store %arg11[%c0_43, %c0_44, %c0_45], %66 {strides = array<i32>} : memref<1x1x128xf32, #tpu.memory_space<vmem>>, vector<1x1x128xf32>,
    } else {
    }
    return
  }
  func.func @transform_0(%arg0: i32, %arg1: i32) -> (i32, i32, i32) {
    %c0_i32 = arith.constant 0 : i32
    %c0_i32_0 = arith.constant 0 : i32
    return %arg0, %arg1, %c0_i32 : i32, i32, i32
  }
  func.func @transform_1(%arg0: i32, %arg1: i32) -> (i32, i32) {
    %c0_i32 = arith.constant 0 : i32
    %c0_i32_0 = arith.constant 0 : i32
    %c0_i32_1 = arith.constant 0 : i32
    return %c0_i32, %c0_i32_0 : i32, i32
  }
  func.func @transform_2(%arg0: i32, %arg1: i32) -> (i32, i32) {
    %c0_i32 = arith.constant 0 : i32
    %c0_i32_0 = arith.constant 0 : i32
    %c0_i32_1 = arith.constant 0 : i32
    return %c0_i32, %c0_i32_0 : i32, i32
  }
  func.func @transform_3(%arg0: i32, %arg1: i32) -> (i32, i32) {
    %c0_i32 = arith.constant 0 : i32
    %c0_i32_0 = arith.constant 0 : i32
    %c0_i32_1 = arith.constant 0 : i32
    return %c0_i32, %c0_i32_0 : i32, i32
  }
  func.func @transform_4(%arg0: i32, %arg1: i32) -> (i32, i32) {
    %c0_i32 = arith.constant 0 : i32
    %c0_i32_0 = arith.constant 0 : i32
    %c0_i32_1 = arith.constant 0 : i32
    return %c0_i32, %c0_i32_0 : i32, i32
  }
  func.func @transform_5(%arg0: i32, %arg1: i32) -> (i32, i32) {
    %c0_i32 = arith.constant 0 : i32
    %c0_i32_0 = arith.constant 0 : i32
    %c0_i32_1 = arith.constant 0 : i32
    return %c0_i32, %c0_i32_0 : i32, i32
  }
  func.func @transform_6(%arg0: i32, %arg1: i32) -> (i32, i32) {
    %c0_i32 = arith.constant 0 : i32
    %c0_i32_0 = arith.constant 0 : i32
    %c0_i32_1 = arith.constant 0 : i32
    return %c0_i32, %c0_i32_0 : i32, i32
  }
  func.func @transform_7(%arg0: i32, %arg1: i32) -> (i32, i32) {
    %c0_i32 = arith.constant 0 : i32
    %c0_i32_0 = arith.constant 0 : i32
    %c0_i32_1 = arith.constant 0 : i32
    return %c0_i32, %c0_i32_0 : i32, i32
  }
  func.func @transform_8(%arg0: i32, %arg1: i32) -> (i32, i32) {
    %c0_i32 = arith.constant 0 : i32
    %c0_i32_0 = arith.constant 0 : i32
    %c0_i32_1 = arith.constant 0 : i32
    return %c0_i32, %c0_i32_0 : i32, i32
  }
  func.func @transform_9(%arg0: i32, %arg1: i32) -> (i32, i32, i32) {
    %c0_i32 = arith.constant 0 : i32
    %c0_i32_0 = arith.constant 0 : i32
    %c0_i32_1 = arith.constant 0 : i32
    return %arg0, %c0_i32, %c0_i32_0 : i32, i32, i32
  }
  func.func @transform_10(%arg0: i32, %arg1: i32) -> (i32, i32, i32) {
    %c0_i32 = arith.constant 0 : i32
    %c0_i32_0 = arith.constant 0 : i32
    %c0_i32_1 = arith.constant 0 : i32
    return %arg0, %c0_i32, %c0_i32_0 : i32, i32, i32
  }
}

</mosaic_0001>

<llo_original>
// kernel: tpu_custom_call.1
$region0: #{tpu_custom_call.1}
  #allocation0 [shape = 'u32[]', space=smem, size = 0x4, offset = 0x4, fixed_abs, tag = 'smem constant byte address 0x4 - core index']
  #allocation1 [shape = 'u32[72,128]{1,0:T(1,128)}', space=vmem, size = 0x9000, scoped, tag = 'internal scratch']
  #allocation2 [shape = 'f32[1,128]{1,0:T(1,128)}', space=vmem, size = 0x200, scoped, tag = 'scratch operand']
  %s0 = inlined_call_operand.hbm [shape: bf16[2,16,128], index: 0, kind: input, shape index: {}]
  %s1 = inlined_call_operand.hbm [shape: bf16[128,128], index: 1, kind: input, shape index: {}]
  %s2 = inlined_call_operand.vmem [shape: f32[1,128], index: 2, kind: input, shape index: {}]
  %s3 = inlined_call_operand.hbm [shape: bf16[128,128], index: 3, kind: input, shape index: {}]
  %s4 = inlined_call_operand.vmem [shape: f32[1,128], index: 4, kind: input, shape index: {}]
  %s5 = inlined_call_operand.hbm [shape: bf16[128,128], index: 5, kind: input, shape index: {}]
  %s6 = inlined_call_operand.vmem [shape: f32[1,128], index: 6, kind: input, shape index: {}]
  %s7 = inlined_call_operand.hbm [shape: bf16[128,128], index: 7, kind: input, shape index: {}]
  %s8 = inlined_call_operand.vmem [shape: f32[1,128], index: 8, kind: input, shape index: {}]
  %s9 = inlined_call_operand.hbm [shape: f32[2,1,128], index: 9, kind: output, shape index: {0}]
  %s10 = inlined_call_operand.hbm [shape: f32[2,1,128], index: 10, kind: output, shape index: {1}]
  %11 = xla_tuple %s9, %s10
  %s12 = sld [smem:[#allocation0]]
  $region105: #{tpu_custom_call.1} parent=0
    _
  %s14 = ssub.s32 1, %s12
  %s15 = scalar_select 0, %s14, %s12
  $region1: #{tpu_custom_call.1} parent=0
    #allocation3 [shape = 'u8[8192]{0}', space=vmem, size = 0x2000, scoped, tag = 'input window, operand 0']
    #allocation4 [shape = 's32[2]{0}', space=sflag, size = 0x8, scoped, tag = 'scoped memory for tpu_custom_call.1']
    #allocation5 [shape = 's32[2]{0}', space=sflag, size = 0x8, scoped, tag = 'scoped memory for tpu_custom_call.1']
    #allocation6 [shape = 'u8[32768]{0}', space=vmem, size = 0x8000, scoped, tag = 'input window, operand 1, single buffered']
    #allocation7 [shape = 's32[1]{0}', space=sflag, size = 0x4, scoped, tag = 'scoped memory for tpu_custom_call.1']
    #allocation8 [shape = 'u8[32768]{0}', space=vmem, size = 0x8000, scoped, tag = 'input window, operand 3, single buffered']
    #allocation9 [shape = 'u8[32768]{0}', space=vmem, size = 0x8000, scoped, tag = 'input window, operand 5, single buffered']
    #allocation10 [shape = 's32[1]{0}', space=sflag, size = 0x4, scoped, tag = 'scoped memory for tpu_custom_call.1']
    #allocation11 [shape = 'u8[32768]{0}', space=vmem, size = 0x8000, scoped, tag = 'input window, operand 7, single buffered']
    #allocation12 [shape = 'u8[1024]{0}', space=vmem, size = 0x400, scoped, tag = 'output window, operand 0']
    #allocation13 [shape = 'u8[1024]{0}', space=vmem, size = 0x400, scoped, tag = 'output window, operand 1']
    #allocation14 [shape = 's32[2]{0}', space=sflag, size = 0x8, scoped, tag = 'scoped memory for tpu_custom_call.1']
    %16 = vsyncpa [#allocation4], 0
    %s17 = scalar_lea.sflag [#allocation4], 1
    %18 = vsyncpa %s17, 0
    %19 = vsyncpa [#allocation7], 0
    %20 = vsyncpa [#allocation10], 0
    %21 = vsyncpa [#allocation5], 0
    %s22 = scalar_lea.sflag [#allocation5], 1
    %23 = vsyncpa %s22, 0
    %24 = vsyncpa [#allocation14], 0
    %s25 = scalar_lea.sflag [#allocation14], 1
    %26 = vsyncpa %s25, 0
    loop: start=0, step=1, limit=4
    $region2: #{tpu_custom_call.1} parent=1 // loop_pre_header
      _
    $region3: #{tpu_custom_call.1} parent=1 // loop_header
      %s28 = sphi 0, %s32
      %p29 = scmp.ge.s32.totalorder %s28, 4
      %s35 = sphi 0, %s47
      %s36 = sphi 0, %s43
      %s37 = sphi 0, %s35
      %s38 = sphi 0, %s36
      %s39 = sphi 0, %s37
      %s40 = sphi 0, %s38
      %s52 = sphi 0, %s54
      %s55 = sphi 0, %s52
      %s56 = sphi 0, %s55
      %s72 = sphi 0, %s56
      %s76 = sphi 0, %s76
      %s78 = sphi 0, %s76
      %s79 = sphi 0, %s78
      %s93 = sphi 0, %s79
      %s97 = sphi 0, %s97
      %s99 = sphi 0, %s97
      %s100 = sphi 0, %s99
      %s114 = sphi 0, %s100
      %s118 = sphi 0, %s118
      %s120 = sphi 0, %s118
      %s121 = sphi 0, %s120
      %s135 = sphi 0, %s121
      %s139 = sphi 0, %s139
      %s141 = sphi 0, %s139
      %s142 = sphi 0, %s141
      %s156 = sphi 0, %s142
      %s160 = sphi 0, %s160
      %s162 = sphi 0, %s160
      %s163 = sphi 0, %s162
      %s177 = sphi 0, %s163
      %s181 = sphi 0, %s181
      %s183 = sphi 0, %s181
      %s184 = sphi 0, %s183
      %s198 = sphi 0, %s184
      %s202 = sphi 0, %s202
      %s204 = sphi 0, %s202
      %s205 = sphi 0, %s204
      %s219 = sphi 0, %s205
      %s223 = sphi 0, %s223
      %s225 = sphi 0, %s223
      %s226 = sphi 0, %s225
      %s240 = sphi 0, %s226
      %s246 = sphi 0, %s248
      %s249 = sphi 0, %s246
      %s250 = sphi 0, %s249
      %s266 = sphi 0, %s250
      %s272 = sphi 0, %s274
      %s275 = sphi 0, %s272
      %s276 = sphi 0, %s275
      %s292 = sphi 0, %s276
    $region4: #{tpu_custom_call.1} parent=1 // loop_header_branch
      %31 = sbr.rel (%p29) target = $region8
    $region5: #{tpu_custom_call.1} parent=1 // loop_body
      %s33 = ssub.s32 %s28, 1
      %s34 = ssub.s32 %s28, 2
      %s41 = sadd.s32 1, %s36
      %p42 = scmp.ge.s32.totalorder %s41, 1
      %s43 = scalar_select %p42, 0, %s41
      %s44 = sadd.s32 1, %s35
      %s45 = scalar_select %p42, %s44, %s35
      %p46 = scmp.ge.s32.totalorder %s45, 2
      %s47 = scalar_select %p46, 0, %s45
      %s48 = ssub.s32 %s35, %s47
      %s49 = ssub.s32 %s36, %s43
      %s50 = sor.u32 %s48, %s49
      %p51 = scmp.eq.s32.totalorder %s50, 0
      %s53 = sadd.s32 %s52, 1
      %s54 = scalar_select %p51, %s52, %s53
      %p57 = pneg %p51
      %p58 = scmp.eq.s32.totalorder %s28, 1
      %p59 = por %p57, %p58
      %p60 = scmp.ne.s32.totalorder %s52, %s55
      %p61 = scmp.eq.s32.totalorder %s28, 0
      %p62 = por %p60, %p61
      %p63 = scmp.ne.s32.totalorder %s52, %s55
      %p64 = scmp.eq.s32.totalorder %s33, 1
      %p65 = por %p63, %p64
      %p66 = scmp.ne.s32.totalorder %s55, %s56
      %p67 = scmp.eq.s32.totalorder %s33, 0
      %p68 = por %p66, %p67
      %p69 = scmp.ne.s32.totalorder %s55, %s56
      %p70 = scmp.eq.s32.totalorder %s34, 1
      %p71 = por %p69, %p70
      %p73 = scmp.ne.s32.totalorder %s56, %s72
      %p74 = scmp.eq.s32.totalorder %s34, 0
      %p75 = por %p73, %p74
      %s77 = sadd.s32 %s76, 1
      %p80 = scmp.eq.s32.totalorder %s28, 1
      %p81 = scmp.ne.s32.totalorder %s76, %s78
      %p82 = scmp.eq.s32.totalorder %s28, 0
      %p83 = por %p81, %p82
      %p84 = scmp.ne.s32.totalorder %s76, %s78
      %p85 = scmp.eq.s32.totalorder %s33, 1
      %p86 = por %p84, %p85
      %p87 = scmp.ne.s32.totalorder %s78, %s79
      %p88 = scmp.eq.s32.totalorder %s33, 0
      %p89 = por %p87, %p88
      %p90 = scmp.ne.s32.totalorder %s78, %s79
      %p91 = scmp.eq.s32.totalorder %s34, 1
      %p92 = por %p90, %p91
      %p94 = scmp.ne.s32.totalorder %s79, %s93
      %p95 = scmp.eq.s32.totalorder %s34, 0
      %p96 = por %p94, %p95
      %s98 = sadd.s32 %s97, 1
      %p101 = scmp.eq.s32.totalorder %s28, 1
      %p102 = scmp.ne.s32.totalorder %s97, %s99
      %p103 = scmp.eq.s32.totalorder %s28, 0
      %p104 = por %p102, %p103
      %p105 = scmp.ne.s32.totalorder %s97, %s99
      %p106 = scmp.eq.s32.totalorder %s33, 1
      %p107 = por %p105, %p106
      %p108 = scmp.ne.s32.totalorder %s99, %s100
      %p109 = scmp.eq.s32.totalorder %s33, 0
      %p110 = por %p108, %p109
      %p111 = scmp.ne.s32.totalorder %s99, %s100
      %p112 = scmp.eq.s32.totalorder %s34, 1
      %p113 = por %p111, %p112
      %p115 = scmp.ne.s32.totalorder %s100, %s114
      %p116 = scmp.eq.s32.totalorder %s34, 0
      %p117 = por %p115, %p116
      %s119 = sadd.s32 %s118, 1
      %p122 = scmp.eq.s32.totalorder %s28, 1
      %p123 = scmp.ne.s32.totalorder %s118, %s120
      %p124 = scmp.eq.s32.totalorder %s28, 0
      %p125 = por %p123, %p124
      %p126 = scmp.ne.s32.totalorder %s118, %s120
      %p127 = scmp.eq.s32.totalorder %s33, 1
      %p128 = por %p126, %p127
      %p129 = scmp.ne.s32.totalorder %s120, %s121
      %p130 = scmp.eq.s32.totalorder %s33, 0
      %p131 = por %p129, %p130
      %p132 = scmp.ne.s32.totalorder %s120, %s121
      %p133 = scmp.eq.s32.totalorder %s34, 1
      %p134 = por %p132, %p133
      %p136 = scmp.ne.s32.totalorder %s121, %s135
      %p137 = scmp.eq.s32.totalorder %s34, 0
      %p138 = por %p136, %p137
      %s140 = sadd.s32 %s139, 1
      %p143 = scmp.eq.s32.totalorder %s28, 1
      %p144 = scmp.ne.s32.totalorder %s139, %s141
      %p145 = scmp.eq.s32.totalorder %s28, 0
      %p146 = por %p144, %p145
      %p147 = scmp.ne.s32.totalorder %s139, %s141
      %p148 = scmp.eq.s32.totalorder %s33, 1
      %p149 = por %p147, %p148
      %p150 = scmp.ne.s32.totalorder %s141, %s142
      %p151 = scmp.eq.s32.totalorder %s33, 0
      %p152 = por %p150, %p151
      %p153 = scmp.ne.s32.totalorder %s141, %s142
      %p154 = scmp.eq.s32.totalorder %s34, 1
      %p155 = por %p153, %p154
      %p157 = scmp.ne.s32.totalorder %s142, %s156
      %p158 = scmp.eq.s32.totalorder %s34, 0
      %p159 = por %p157, %p158
      %s161 = sadd.s32 %s160, 1
      %p164 = scmp.eq.s32.totalorder %s28, 1
      %p165 = scmp.ne.s32.totalorder %s160, %s162
      %p166 = scmp.eq.s32.totalorder %s28, 0
      %p167 = por %p165, %p166
      %p168 = scmp.ne.s32.totalorder %s160, %s162
      %p169 = scmp.eq.s32.totalorder %s33, 1
      %p170 = por %p168, %p169
      %p171 = scmp.ne.s32.totalorder %s162, %s163
      %p172 = scmp.eq.s32.totalorder %s33, 0
      %p173 = por %p171, %p172
      %p174 = scmp.ne.s32.totalorder %s162, %s163
      %p175 = scmp.eq.s32.totalorder %s34, 1
      %p176 = por %p174, %p175
      %p178 = scmp.ne.s32.totalorder %s163, %s177
      %p179 = scmp.eq.s32.totalorder %s34, 0
      %p180 = por %p178, %p179
      %s182 = sadd.s32 %s181, 1
      %p185 = scmp.eq.s32.totalorder %s28, 1
      %p186 = scmp.ne.s32.totalorder %s181, %s183
      %p187 = scmp.eq.s32.totalorder %s28, 0
      %p188 = por %p186, %p187
      %p189 = scmp.ne.s32.totalorder %s181, %s183
      %p190 = scmp.eq.s32.totalorder %s33, 1
      %p191 = por %p189, %p190
      %p192 = scmp.ne.s32.totalorder %s183, %s184
      %p193 = scmp.eq.s32.totalorder %s33, 0
      %p194 = por %p192, %p193
      %p195 = scmp.ne.s32.totalorder %s183, %s184
      %p196 = scmp.eq.s32.totalorder %s34, 1
      %p197 = por %p195, %p196
      %p199 = scmp.ne.s32.totalorder %s184, %s198
      %p200 = scmp.eq.s32.totalorder %s34, 0
      %p201 = por %p199, %p200
      %s203 = sadd.s32 %s202, 1
      %p206 = scmp.eq.s32.totalorder %s28, 1
      %p207 = scmp.ne.s32.totalorder %s202, %s204
      %p208 = scmp.eq.s32.totalorder %s28, 0
      %p209 = por %p207, %p208
      %p210 = scmp.ne.s32.totalorder %s202, %s204
      %p211 = scmp.eq.s32.totalorder %s33, 1
      %p212 = por %p210, %p211
      %p213 = scmp.ne.s32.totalorder %s204, %s205
      %p214 = scmp.eq.s32.totalorder %s33, 0
      %p215 = por %p213, %p214
      %p216 = scmp.ne.s32.totalorder %s204, %s205
      %p217 = scmp.eq.s32.totalorder %s34, 1
      %p218 = por %p216, %p217
      %p220 = scmp.ne.s32.totalorder %s205, %s219
      %p221 = scmp.eq.s32.totalorder %s34, 0
      %p222 = por %p220, %p221
      %s224 = sadd.s32 %s223, 1
      %p227 = scmp.eq.s32.totalorder %s28, 1
      %p228 = scmp.ne.s32.totalorder %s223, %s225
      %p229 = scmp.eq.s32.totalorder %s28, 0
      %p230 = por %p228, %p229
      %p231 = scmp.ne.s32.totalorder %s223, %s225
      %p232 = scmp.eq.s32.totalorder %s33, 1
      %p233 = por %p231, %p232
      %p234 = scmp.ne.s32.totalorder %s225, %s226
      %p235 = scmp.eq.s32.totalorder %s33, 0
      %p236 = por %p234, %p235
      %p237 = scmp.ne.s32.totalorder %s225, %s226
      %p238 = scmp.eq.s32.totalorder %s34, 1
      %p239 = por %p237, %p238
      %p241 = scmp.ne.s32.totalorder %s226, %s240
      %p242 = scmp.eq.s32.totalorder %s34, 0
      %p243 = por %p241, %p242
      %s244 = ssub.s32 %s35, %s47
      %p245 = scmp.eq.s32.totalorder %s244, 0
      %s247 = sadd.s32 %s246, 1
      %s248 = scalar_select %p245, %s246, %s247
      %p251 = pneg %p245
      %p252 = scmp.eq.s32.totalorder %s28, 1
      %p253 = por %p251, %p252
      %p254 = scmp.ne.s32.totalorder %s246, %s249
      %p255 = scmp.eq.s32.totalorder %s28, 0
      %p256 = por %p254, %p255
      %p257 = scmp.ne.s32.totalorder %s246, %s249
      %p258 = scmp.eq.s32.totalorder %s33, 1
      %p259 = por %p257, %p258
      %p260 = scmp.ne.s32.totalorder %s249, %s250
      %p261 = scmp.eq.s32.totalorder %s33, 0
      %p262 = por %p260, %p261
      %p263 = scmp.ne.s32.totalorder %s249, %s250
      %p264 = scmp.eq.s32.totalorder %s34, 1
      %p265 = por %p263, %p264
      %p267 = scmp.ne.s32.totalorder %s250, %s266
      %p268 = scmp.eq.s32.totalorder %s34, 0
      %p269 = por %p267, %p268
      %s270 = ssub.s32 %s35, %s47
      %p271 = scmp.eq.s32.totalorder %s270, 0
      %s273 = sadd.s32 %s272, 1
      %s274 = scalar_select %p271, %s272, %s273
      %p277 = pneg %p271
      %p278 = scmp.eq.s32.totalorder %s28, 1
      %p279 = por %p277, %p278
      %p280 = scmp.ne.s32.totalorder %s272, %s275
      %p281 = scmp.eq.s32.totalorder %s28, 0
      %p282 = por %p280, %p281
      %p283 = scmp.ne.s32.totalorder %s272, %s275
      %p284 = scmp.eq.s32.totalorder %s33, 1
      %p285 = por %p283, %p284
      %p286 = scmp.ne.s32.totalorder %s275, %s276
      %p287 = scmp.eq.s32.totalorder %s33, 0
      %p288 = por %p286, %p287
      %p289 = scmp.ne.s32.totalorder %s275, %s276
      %p290 = scmp.eq.s32.totalorder %s34, 1
      %p291 = por %p289, %p290
      %p293 = scmp.ne.s32.totalorder %s276, %s292
      %p294 = scmp.eq.s32.totalorder %s34, 0
      %p295 = por %p293, %p294
      %p296 = scmp.le.s32.totalorder 1, %s28
      %p297 = scmp.lt.s32.totalorder %s28, 3
      %p298 = pnand %p296, %p297
      %p299 = pneg %p298
      // Predicated region
      $region9: #{tpu_custom_call.1} parent=5 // pred_check
        _
      $region10: #{tpu_custom_call.1} parent=5 // pred_check_branch
        %301 = sbr.rel (%p298) target = $region12
      $region11: #{tpu_custom_call.1} parent=5 // pred_region
        %s302 = ssub.s32 %s28, 1
        // Predicated region
        $region13: #{tpu_custom_call.1} parent=11 // pred_check
          %p303 = pneg %p89
        $region14: #{tpu_custom_call.1} parent=11 // pred_check_branch
          %305 = sbr.rel (%p303) target = $region16
        $region15: #{tpu_custom_call.1} parent=11 // pred_region
          %307 = vsyncadd [#allocation7], 0
          %s308 = sshll.u32 %s1, 4
          %s309 = int_to_ptr.hbm [resolvable:$true] %s308
          %s310 = sshll.u32 [#allocation6], 4
          %s311 = int_to_ptr.vmem [resolvable:$true] %s310
          %316 = dma.hbm_to_vmem [thread:$0]  %s309, 1024, %s311, [#allocation7], 64, 64, 4
        $region16: #{tpu_custom_call.1} parent=11 // pred_fallthru
          _
        // Predicated region
        $region17: #{tpu_custom_call.1} parent=11 // pred_check
          %p317 = pneg %p110
        $region18: #{tpu_custom_call.1} parent=11 // pred_check_branch
          %319 = sbr.rel (%p317) target = $region20
        $region19: #{tpu_custom_call.1} parent=11 // pred_region
          _
        $region20: #{tpu_custom_call.1} parent=11 // pred_fallthru
          _
        // Predicated region
        $region21: #{tpu_custom_call.1} parent=11 // pred_check
          %p320 = pneg %p131
        $region22: #{tpu_custom_call.1} parent=11 // pred_check_branch
          %322 = sbr.rel (%p320) target = $region24
        $region23: #{tpu_custom_call.1} parent=11 // pred_region
          %324 = vsyncadd [#allocation7], 0
          %s325 = sshll.u32 %s3, 4
          %s326 = int_to_ptr.hbm [resolvable:$true] %s325
          %s327 = sshll.u32 [#allocation8], 4
          %s328 = int_to_ptr.vmem [resolvable:$true] %s327
          %333 = dma.hbm_to_vmem [thread:$0]  %s326, 1024, %s328, [#allocation7], 64, 64, 4
        $region24: #{tpu_custom_call.1} parent=11 // pred_fallthru
          _
        // Predicated region
        $region25: #{tpu_custom_call.1} parent=11 // pred_check
          %p334 = pneg %p152
        $region26: #{tpu_custom_call.1} parent=11 // pred_check_branch
          %336 = sbr.rel (%p334) target = $region28
        $region27: #{tpu_custom_call.1} parent=11 // pred_region
          _
        $region28: #{tpu_custom_call.1} parent=11 // pred_fallthru
          _
        // Predicated region
        $region29: #{tpu_custom_call.1} parent=11 // pred_check
          %p337 = pneg %p173
        $region30: #{tpu_custom_call.1} parent=11 // pred_check_branch
          %339 = sbr.rel (%p337) target = $region32
        $region31: #{tpu_custom_call.1} parent=11 // pred_region
          %341 = vsyncadd [#allocation10], 0
          %s342 = sshll.u32 %s5, 4
          %s343 = int_to_ptr.hbm [resolvable:$true] %s342
          %s344 = sshll.u32 [#allocation9], 4
          %s345 = int_to_ptr.vmem [resolvable:$true] %s344
          %350 = dma.hbm_to_vmem [thread:$0]  %s343, 1024, %s345, [#allocation10], 64, 64, 4
        $region32: #{tpu_custom_call.1} parent=11 // pred_fallthru
          _
        // Predicated region
        $region33: #{tpu_custom_call.1} parent=11 // pred_check
          %p351 = pneg %p194
        $region34: #{tpu_custom_call.1} parent=11 // pred_check_branch
          %353 = sbr.rel (%p351) target = $region36
        $region35: #{tpu_custom_call.1} parent=11 // pred_region
          _
        $region36: #{tpu_custom_call.1} parent=11 // pred_fallthru
          _
        // Predicated region
        $region37: #{tpu_custom_call.1} parent=11 // pred_check
          %p354 = pneg %p215
        $region38: #{tpu_custom_call.1} parent=11 // pred_check_branch
          %356 = sbr.rel (%p354) target = $region40
        $region39: #{tpu_custom_call.1} parent=11 // pred_region
          %358 = vsyncadd [#allocation10], 0
          %s359 = sshll.u32 %s7, 4
          %s360 = int_to_ptr.hbm [resolvable:$true] %s359
          %s361 = sshll.u32 [#allocation11], 4
          %s362 = int_to_ptr.vmem [resolvable:$true] %s361
          %367 = dma.hbm_to_vmem [thread:$0]  %s360, 1024, %s362, [#allocation10], 64, 64, 4
        $region40: #{tpu_custom_call.1} parent=11 // pred_fallthru
          _
        // Predicated region
        $region41: #{tpu_custom_call.1} parent=11 // pred_check
          %p368 = pneg %p236
        $region42: #{tpu_custom_call.1} parent=11 // pred_check_branch
          %370 = sbr.rel (%p368) target = $region44
        $region43: #{tpu_custom_call.1} parent=11 // pred_region
          _
        $region44: #{tpu_custom_call.1} parent=11 // pred_fallthru
          _
      $region12: #{tpu_custom_call.1} parent=5 // pred_fallthru
        _
      %p371 = scmp.lt.s32.totalorder %s28, 2
      // Predicated region
      $region45: #{tpu_custom_call.1} parent=5 // pred_check
        %p372 = pneg %p371
      $region46: #{tpu_custom_call.1} parent=5 // pred_check_branch
        %374 = sbr.rel (%p372) target = $region48
      $region47: #{tpu_custom_call.1} parent=5 // pred_region
        // Predicated region
        $region49: #{tpu_custom_call.1} parent=47 // pred_check
          %p375 = pneg %p62
        $region50: #{tpu_custom_call.1} parent=47 // pred_check_branch
          %377 = sbr.rel (%p375) target = $region52
        $region51: #{tpu_custom_call.1} parent=47 // pred_region
          %s378 = sand.u32 %s52, 1
          %s379 = scalar_lea.sflag [#allocation4], %s378
          %s380 = sand.u32 %s52, 1
          %s381 = smul.addr %s380, 8
          %s382 = scalar_lea.vmem [#allocation3], %s381
          %s383 = smul.u32 2, %s36
          %385 = vsyncadd %s379, 0
          %s386 = smul.addr %s35, 2
          %s387 = sadd.s32 %s383, %s386
          %s388 = smul.addr %s387, 4
          %s389 = scalar_lea.hbm %s0, %s388
          %s390 = sshll.u32 %s389, 4
          %s391 = int_to_ptr.hbm [resolvable:$true] %s390
          %s392 = sshll.u32 %s382, 4
          %s393 = int_to_ptr.vmem [resolvable:$true] %s392
          %398 = dma.hbm_to_vmem [thread:$0]  %s391, 128, %s393, %s379, 64, 64, 4
        $region52: #{tpu_custom_call.1} parent=47 // pred_fallthru
          _
      $region48: #{tpu_custom_call.1} parent=5 // pred_fallthru
        _
      %p399 = scmp.le.s32.totalorder 1, %s28
      %p400 = scmp.lt.s32.totalorder %s28, 3
      %p401 = pnand %p399, %p400
      %p402 = pneg %p401
      // Predicated region
      $region53: #{tpu_custom_call.1} parent=5 // pred_check
        _
      $region54: #{tpu_custom_call.1} parent=5 // pred_check_branch
        %404 = sbr.rel (%p401) target = $region56
      $region55: #{tpu_custom_call.1} parent=5 // pred_region
        %s405 = ssub.s32 %s28, 1
        %s406 = sand.u32 %s55, 1
        %s407 = scalar_lea.sflag [#allocation4], %s406
        %s408 = sand.u32 %s55, 1
        %s409 = smul.addr %s408, 8
        %s410 = scalar_lea.vmem [#allocation3], %s409
        // Predicated region
        $region57: #{tpu_custom_call.1} parent=55 // pred_check
          %p411 = pneg %p68
        $region58: #{tpu_custom_call.1} parent=55 // pred_check_branch
          %413 = sbr.rel (%p411) target = $region60
        $region59: #{tpu_custom_call.1} parent=55 // pred_region
          %415 = dma.done %s407, 128
        $region60: #{tpu_custom_call.1} parent=55 // pred_fallthru
          _
        // Predicated region
        $region61: #{tpu_custom_call.1} parent=55 // pred_check
          %p416 = pneg %p89
        $region62: #{tpu_custom_call.1} parent=55 // pred_check_branch
          %418 = sbr.rel (%p416) target = $region64
        $region63: #{tpu_custom_call.1} parent=55 // pred_region
          %420 = dma.done [#allocation7], 1024
        $region64: #{tpu_custom_call.1} parent=55 // pred_fallthru
          _
        // Predicated region
        $region65: #{tpu_custom_call.1} parent=55 // pred_check
          %p421 = pneg %p131
        $region66: #{tpu_custom_call.1} parent=55 // pred_check_branch
          %423 = sbr.rel (%p421) target = $region68
        $region67: #{tpu_custom_call.1} parent=55 // pred_region
          %425 = dma.done [#allocation7], 1024
        $region68: #{tpu_custom_call.1} parent=55 // pred_fallthru
          _
        // Predicated region
        $region69: #{tpu_custom_call.1} parent=55 // pred_check
          %p426 = pneg %p173
        $region70: #{tpu_custom_call.1} parent=55 // pred_check_branch
          %428 = sbr.rel (%p426) target = $region72
        $region71: #{tpu_custom_call.1} parent=55 // pred_region
          %430 = dma.done [#allocation10], 1024
        $region72: #{tpu_custom_call.1} parent=55 // pred_fallthru
          _
        // Predicated region
        $region73: #{tpu_custom_call.1} parent=55 // pred_check
          %p431 = pneg %p215
        $region74: #{tpu_custom_call.1} parent=55 // pred_check_branch
          %433 = sbr.rel (%p431) target = $region76
        $region75: #{tpu_custom_call.1} parent=55 // pred_region
          %435 = dma.done [#allocation10], 1024
        $region76: #{tpu_custom_call.1} parent=55 // pred_fallthru
          _
        %s436 = sand.u32 %s55, 1
        %s437 = scalar_lea.sflag [#allocation4], %s436
        %s438 = sand.u32 %s55, 1
        %s439 = smul.addr %s438, 8
        %s440 = scalar_lea.vmem [#allocation3], %s439
        %p441 = pneg %p68
        %p442 = pneg %p65
        %p443 = pneg %p89
        %p444 = pneg %p86
        %p445 = pneg %p110
        %p446 = pneg %p107
        %p447 = pneg %p131
        %p448 = pneg %p128
        %p449 = pneg %p152
        %p450 = pneg %p149
        %p451 = pneg %p173
        %p452 = pneg %p170
        %p453 = pneg %p194
        %p454 = pneg %p191
        %p455 = pneg %p215
        %p456 = pneg %p212
        %p457 = pneg %p236
        %p458 = pneg %p233
        %p459 = pneg %p262
        %p460 = pneg %p259
        %s461 = sand.u32 %s249, 1
        %s462 = scalar_lea.sflag [#allocation5], %s461
        %s463 = sand.u32 %s249, 1
        %s464 = scalar_lea.vmem [#allocation12], %s463
        %p465 = pneg %p288
        %p466 = pneg %p285
        %s467 = sand.u32 %s275, 1
        %s468 = scalar_lea.sflag [#allocation14], %s467
        %s469 = sand.u32 %s275, 1
        %s470 = scalar_lea.vmem [#allocation13], %s469
        %s471 = smul.u32 2, %s38
        %p472 = scmp.eq.s32.totalorder %s38, 0
        // Predicated region
        $region77: #{tpu_custom_call.1} parent=55 // pred_check
          %p473 = pneg %p472
        $region78: #{tpu_custom_call.1} parent=55 // pred_check_branch
          %475 = sbr.rel (%p473) target = $region80
        $region79: #{tpu_custom_call.1} parent=55 // pred_region
          %476 = vst [vmem:[#allocation2] sm:$0x1] 0.0
        $region80: #{tpu_custom_call.1} parent=55 // pred_fallthru
          _
        %v477 = vld [vmem:[%s410] sm:$0xf]
        %v478 = vld [vmem:[%s410 + $0x4] sm:$0xf]
        %v479 = vld [vmem:[#allocation6] sm:$0xf]
        %v480 = vld [vmem:[#allocation6 + $0x4] sm:$0xf]
        %v481 = vld [vmem:[#allocation6 + $0x8] sm:$0xf]
        %v482 = vld [vmem:[#allocation6 + $0xc] sm:$0xf]
        %v483 = vld [vmem:[#allocation6 + $0x10] sm:$0xf]
        %v484 = vld [vmem:[#allocation6 + $0x14] sm:$0xf]
        %v485 = vld [vmem:[#allocation6 + $0x18] sm:$0xf]
        %v486 = vld [vmem:[#allocation6 + $0x1c] sm:$0xf]
        %v487 = vld [vmem:[#allocation6 + $0x20] sm:$0xf]
        %v488 = vld [vmem:[#allocation6 + $0x24] sm:$0xf]
        %v489 = vld [vmem:[#allocation6 + $0x28] sm:$0xf]
        %v490 = vld [vmem:[#allocation6 + $0x2c] sm:$0xf]
        %v491 = vld [vmem:[#allocation6 + $0x30] sm:$0xf]
        %v492 = vld [vmem:[#allocation6 + $0x34] sm:$0xf]
        %v493 = vld [vmem:[#allocation6 + $0x38] sm:$0xf]
        %v494 = vld [vmem:[#allocation6 + $0x3c] sm:$0xf]
        %v495 = vld [vmem:[%s2] sm:$0x1]
        %v497 = vperm.slane %v495, 0
        %v501 = vunpack.c.l.b16 %v477
        %v502 = vunpack.c.l.b16 %v478
        %v503 = vpack.c.b16 %v502, %v501
        %v521 = vunpack.c.l.b16 %v479
        %v522 = vunpack.c.l.b16 %v480
        %v523 = vunpack.c.l.b16 %v481
        %v524 = vunpack.c.l.b16 %v482
        %v525 = vunpack.c.l.b16 %v483
        %v526 = vunpack.c.l.b16 %v484
        %v527 = vunpack.c.l.b16 %v485
        %v528 = vunpack.c.l.b16 %v486
        %v529 = vunpack.c.l.b16 %v487
        %v530 = vunpack.c.l.b16 %v488
        %v531 = vunpack.c.l.b16 %v489
        %v532 = vunpack.c.l.b16 %v490
        %v533 = vunpack.c.l.b16 %v491
        %v534 = vunpack.c.l.b16 %v492
        %v535 = vunpack.c.l.b16 %v493
        %v536 = vunpack.c.l.b16 %v494
        %v537 = vpack.c.b16 %v522, %v521
        %v538 = vpack.c.b16 %v524, %v523
        %v539 = vpack.c.b16 %v526, %v525
        %v540 = vpack.c.b16 %v528, %v527
        %v541 = vpack.c.b16 %v530, %v529
        %v542 = vpack.c.b16 %v532, %v531
        %v543 = vpack.c.b16 %v534, %v533
        %v544 = vpack.c.b16 %v536, %v535
        %553 = vmatpush.bf16.msra.mxu0 %v544
        %554 = vmatpush.bf16.msra.mxu0 %v543
        %555 = vmatpush.bf16.msra.mxu0 %v542
        %556 = vmatpush.bf16.msra.mxu0 %v541
        %557 = vmatpush.bf16.msra.mxu0 %v540
        %558 = vmatpush.bf16.msra.mxu0 %v539
        %559 = vmatpush.bf16.msra.mxu0 %v538
        %560 = vmatpush.bf16.msra.mxu0 %v537
        %561 = vmatmul.bf16.gmra.mxu0 %v503
        %v562 = vpop.f32.mrf.mxu0
        %v563 = vadd.f32 %v497, %v562
        %v564 = vpop.f32.mrf.mxu0
        %v565 = vadd.f32 %v497, %v564
        %566 = vdwg.mxu0
        %vm567 = vcmp.gt.f32.partialorder %v563, 0.0
        %vm568 = vcmp.gt.f32.partialorder %v565, 0.0
        %v569 = vmul.f32 %v563, 0.01
        %v570 = vmul.f32 %v565, 0.01
        %v571 = vsel %vm567, %v563, %v569
        %v572 = vsel %vm568, %v565, %v570
        %v573 = vpack.c.bf16 %v572, %v571
        %v574 = vld [vmem:[#allocation8] sm:$0xf]
        %v575 = vld [vmem:[#allocation8 + $0x4] sm:$0xf]
        %v576 = vld [vmem:[#allocation8 + $0x8] sm:$0xf]
        %v577 = vld [vmem:[#allocation8 + $0xc] sm:$0xf]
        %v578 = vld [vmem:[#allocation8 + $0x10] sm:$0xf]
        %v579 = vld [vmem:[#allocation8 + $0x14] sm:$0xf]
        %v580 = vld [vmem:[#allocation8 + $0x18] sm:$0xf]
        %v581 = vld [vmem:[#allocation8 + $0x1c] sm:$0xf]
        %v582 = vld [vmem:[#allocation8 + $0x20] sm:$0xf]
        %v583 = vld [vmem:[#allocation8 + $0x24] sm:$0xf]
        %v584 = vld [vmem:[#allocation8 + $0x28] sm:$0xf]
        %v585 = vld [vmem:[#allocation8 + $0x2c] sm:$0xf]
        %v586 = vld [vmem:[#allocation8 + $0x30] sm:$0xf]
        %v587 = vld [vmem:[#allocation8 + $0x34] sm:$0xf]
        %v588 = vld [vmem:[#allocation8 + $0x38] sm:$0xf]
        %v589 = vld [vmem:[#allocation8 + $0x3c] sm:$0xf]
        %v590 = vld [vmem:[%s4] sm:$0x1]
        %v592 = vperm.slane %v590, 0
        %v610 = vunpack.c.l.b16 %v574
        %v611 = vunpack.c.l.b16 %v575
        %v612 = vunpack.c.l.b16 %v576
        %v613 = vunpack.c.l.b16 %v577
        %v614 = vunpack.c.l.b16 %v578
        %v615 = vunpack.c.l.b16 %v579
        %v616 = vunpack.c.l.b16 %v580
        %v617 = vunpack.c.l.b16 %v581
        %v618 = vunpack.c.l.b16 %v582
        %v619 = vunpack.c.l.b16 %v583
        %v620 = vunpack.c.l.b16 %v584
        %v621 = vunpack.c.l.b16 %v585
        %v622 = vunpack.c.l.b16 %v586
        %v623 = vunpack.c.l.b16 %v587
        %v624 = vunpack.c.l.b16 %v588
        %v625 = vunpack.c.l.b16 %v589
        %v626 = vpack.c.b16 %v611, %v610
        %v627 = vpack.c.b16 %v613, %v612
        %v628 = vpack.c.b16 %v615, %v614
        %v629 = vpack.c.b16 %v617, %v616
        %v630 = vpack.c.b16 %v619, %v618
        %v631 = vpack.c.b16 %v621, %v620
        %v632 = vpack.c.b16 %v623, %v622
        %v633 = vpack.c.b16 %v625, %v624
        %642 = vmatpush.bf16.msra.mxu0 %v633
        %643 = vmatpush.bf16.msra.mxu0 %v632
        %644 = vmatpush.bf16.msra.mxu0 %v631
        %645 = vmatpush.bf16.msra.mxu0 %v630
        %646 = vmatpush.bf16.msra.mxu0 %v629
        %647 = vmatpush.bf16.msra.mxu0 %v628
        %648 = vmatpush.bf16.msra.mxu0 %v627
        %649 = vmatpush.bf16.msra.mxu0 %v626
        %650 = vmatmul.bf16.gmra.mxu0 %v573
        %v651 = vpop.f32.mrf.mxu0
        %v652 = vadd.f32 %v592, %v651
        %v653 = vpop.f32.mrf.mxu0
        %v654 = vadd.f32 %v592, %v653
        %655 = vdwg.mxu0
        %vm656 = vcmp.gt.f32.partialorder %v652, 0.0
        %vm657 = vcmp.gt.f32.partialorder %v654, 0.0
        %v658 = vmul.f32 %v652, 0.01
        %v659 = vmul.f32 %v654, 0.01
        %v660 = vsel %vm656, %v652, %v658
        %v661 = vsel %vm657, %v654, %v659
        %v662 = vpack.c.bf16 %v661, %v660
        %v663 = vld [vmem:[#allocation9] sm:$0xf]
        %v664 = vld [vmem:[#allocation9 + $0x4] sm:$0xf]
        %v665 = vld [vmem:[#allocation9 + $0x8] sm:$0xf]
        %v666 = vld [vmem:[#allocation9 + $0xc] sm:$0xf]
        %v667 = vld [vmem:[#allocation9 + $0x10] sm:$0xf]
        %v668 = vld [vmem:[#allocation9 + $0x14] sm:$0xf]
        %v669 = vld [vmem:[#allocation9 + $0x18] sm:$0xf]
        %v670 = vld [vmem:[#allocation9 + $0x1c] sm:$0xf]
        %v671 = vld [vmem:[#allocation9 + $0x20] sm:$0xf]
        %v672 = vld [vmem:[#allocation9 + $0x24] sm:$0xf]
        %v673 = vld [vmem:[#allocation9 + $0x28] sm:$0xf]
        %v674 = vld [vmem:[#allocation9 + $0x2c] sm:$0xf]
        %v675 = vld [vmem:[#allocation9 + $0x30] sm:$0xf]
        %v676 = vld [vmem:[#allocation9 + $0x34] sm:$0xf]
        %v677 = vld [vmem:[#allocation9 + $0x38] sm:$0xf]
        %v678 = vld [vmem:[#allocation9 + $0x3c] sm:$0xf]
        %v679 = vld [vmem:[%s6] sm:$0x1]
        %v681 = vperm.slane %v679, 0
        %v699 = vunpack.c.l.b16 %v663
        %v700 = vunpack.c.l.b16 %v664
        %v701 = vunpack.c.l.b16 %v665
        %v702 = vunpack.c.l.b16 %v666
        %v703 = vunpack.c.l.b16 %v667
        %v704 = vunpack.c.l.b16 %v668
        %v705 = vunpack.c.l.b16 %v669
        %v706 = vunpack.c.l.b16 %v670
        %v707 = vunpack.c.l.b16 %v671
        %v708 = vunpack.c.l.b16 %v672
        %v709 = vunpack.c.l.b16 %v673
        %v710 = vunpack.c.l.b16 %v674
        %v711 = vunpack.c.l.b16 %v675
        %v712 = vunpack.c.l.b16 %v676
        %v713 = vunpack.c.l.b16 %v677
        %v714 = vunpack.c.l.b16 %v678
        %v715 = vpack.c.b16 %v700, %v699
        %v716 = vpack.c.b16 %v702, %v701
        %v717 = vpack.c.b16 %v704, %v703
        %v718 = vpack.c.b16 %v706, %v705
        %v719 = vpack.c.b16 %v708, %v707
        %v720 = vpack.c.b16 %v710, %v709
        %v721 = vpack.c.b16 %v712, %v711
        %v722 = vpack.c.b16 %v714, %v713
        %731 = vmatpush.bf16.msra.mxu0 %v722
        %732 = vmatpush.bf16.msra.mxu0 %v721
        %733 = vmatpush.bf16.msra.mxu0 %v720
        %734 = vmatpush.bf16.msra.mxu0 %v719
        %735 = vmatpush.bf16.msra.mxu0 %v718
        %736 = vmatpush.bf16.msra.mxu0 %v717
        %737 = vmatpush.bf16.msra.mxu0 %v716
        %738 = vmatpush.bf16.msra.mxu0 %v715
        %739 = vmatmul.bf16.gmra.mxu0 %v662
        %v740 = vpop.f32.mrf.mxu0
        %v741 = vadd.f32 %v681, %v740
        %v742 = vpop.f32.mrf.mxu0
        %v743 = vadd.f32 %v681, %v742
        %744 = vdwg.mxu0
        %vm745 = vcmp.gt.f32.partialorder %v741, 0.0
        %vm746 = vcmp.gt.f32.partialorder %v743, 0.0
        %v747 = vmul.f32 %v741, 0.01
        %v748 = vmul.f32 %v743, 0.01
        %v749 = vsel %vm745, %v741, %v747
        %v750 = vsel %vm746, %v743, %v748
        %v751 = vlaneseq
        %v752 = vand.u32 %v751, 127
        %s753 = smul.u32 %s38, 16
        %v754 = vstv %s753
        %v755 = vadd.s32 %v752, %v754
        %vm756 = vcmp.lt.s32.totalorder %v755, 8
        %v757 = vsel %vm756, 1.0, 0.0
        %v758 = vld [vmem:[#allocation2] sm:$0x1]
        %vm759 = vcmask 130048
        %v761 = vsel %vm759, %v757, 0
        %763 = vmatpush.msra.mxu0 0.0
        %764 = vmatpush.msra.mxu0 0.0
        %765 = vmatpush.msra.mxu0 0.0
        %766 = vmatpush.msra.mxu0 0.0
        %767 = vmatpush.msra.mxu0 0.0
        %768 = vmatpush.msra.mxu0 0.0
        %769 = vmatpush.msra.mxu0 0.0
        %770 = vmatpush.msra.mxu0 0.0
        %771 = vmatpush.msra.mxu0 0.0
        %772 = vmatpush.msra.mxu0 0.0
        %773 = vmatpush.msra.mxu0 0.0
        %774 = vmatpush.msra.mxu0 0.0
        %775 = vmatpush.msra.mxu0 0.0
        %776 = vmatpush.msra.mxu0 0.0
        %777 = vmatpush.msra.mxu0 %v750
        %778 = vmatpush.msra.mxu0 %v749
        %779 = vmatmul.f32.gmra.mxu0 %v761
        %v780 = vpop.f32.mrf.mxu0
        %v781 = vadd.f32 0.0, %v780
        %782 = vdwg.mxu0
        %v783 = vadd.f32 %v758, %v781
        %784 = vst [vmem:[#allocation2] sm:$0x1] %v783
        // Predicated region
        $region81: #{tpu_custom_call.1} parent=55 // pred_check
          %p785 = pneg %p472
        $region82: #{tpu_custom_call.1} parent=55 // pred_check_branch
          %787 = sbr.rel (%p785) target = $region84
        $region83: #{tpu_custom_call.1} parent=55 // pred_region
          %v788 = vld [vmem:[#allocation2] sm:$0x1]
          %v789 = vmul.f32 %v788, 0.125
          %790 = vst [vmem:[%s470] sm:$0x1] %v789
          %v791 = vpack.c.bf16 %v789, %v789
          %v792 = vld [vmem:[#allocation11] sm:$0xf]
          %v793 = vld [vmem:[#allocation11 + $0x4] sm:$0xf]
          %v794 = vld [vmem:[#allocation11 + $0x8] sm:$0xf]
          %v795 = vld [vmem:[#allocation11 + $0xc] sm:$0xf]
          %v796 = vld [vmem:[#allocation11 + $0x10] sm:$0xf]
          %v797 = vld [vmem:[#allocation11 + $0x14] sm:$0xf]
          %v798 = vld [vmem:[#allocation11 + $0x18] sm:$0xf]
          %v799 = vld [vmem:[#allocation11 + $0x1c] sm:$0xf]
          %v800 = vld [vmem:[#allocation11 + $0x20] sm:$0xf]
          %v801 = vld [vmem:[#allocation11 + $0x24] sm:$0xf]
          %v802 = vld [vmem:[#allocation11 + $0x28] sm:$0xf]
          %v803 = vld [vmem:[#allocation11 + $0x2c] sm:$0xf]
          %v804 = vld [vmem:[#allocation11 + $0x30] sm:$0xf]
          %v805 = vld [vmem:[#allocation11 + $0x34] sm:$0xf]
          %v806 = vld [vmem:[#allocation11 + $0x38] sm:$0xf]
          %v807 = vld [vmem:[#allocation11 + $0x3c] sm:$0xf]
          %v808 = vld [vmem:[%s8] sm:$0x1]
          %v825 = vunpack.c.l.b16 %v792
          %v826 = vunpack.c.l.b16 %v793
          %v827 = vunpack.c.l.b16 %v794
          %v828 = vunpack.c.l.b16 %v795
          %v829 = vunpack.c.l.b16 %v796
          %v830 = vunpack.c.l.b16 %v797
          %v831 = vunpack.c.l.b16 %v798
          %v832 = vunpack.c.l.b16 %v799
          %v833 = vunpack.c.l.b16 %v800
          %v834 = vunpack.c.l.b16 %v801
          %v835 = vunpack.c.l.b16 %v802
          %v836 = vunpack.c.l.b16 %v803
          %v837 = vunpack.c.l.b16 %v804
          %v838 = vunpack.c.l.b16 %v805
          %v839 = vunpack.c.l.b16 %v806
          %v840 = vunpack.c.l.b16 %v807
          %v841 = vpack.c.b16 %v826, %v825
          %v842 = vpack.c.b16 %v828, %v827
          %v843 = vpack.c.b16 %v830, %v829
          %v844 = vpack.c.b16 %v832, %v831
          %v845 = vpack.c.b16 %v834, %v833
          %v846 = vpack.c.b16 %v836, %v835
          %v847 = vpack.c.b16 %v838, %v837
          %v848 = vpack.c.b16 %v840, %v839
          %857 = vmatpush.bf16.msra.mxu0 %v848
          %858 = vmatpush.bf16.msra.mxu0 %v847
          %859 = vmatpush.bf16.msra.mxu0 %v846
          %860 = vmatpush.bf16.msra.mxu0 %v845
          %861 = vmatpush.bf16.msra.mxu0 %v844
          %862 = vmatpush.bf16.msra.mxu0 %v843
          %863 = vmatpush.bf16.msra.mxu0 %v842
          %864 = vmatpush.bf16.msra.mxu0 %v841
          %865 = vmatmul.bf16.gmra.mxu0 %v791
          %v866 = vpop.f32.mrf.mxu0
          %v867 = vadd.f32 %v808, %v866
          %v868 = vpop.f32.mrf.mxu0
          %869 = vdwg.mxu0
          %870 = vst [vmem:[%s464] sm:$0x1] %v867
        $region84: #{tpu_custom_call.1} parent=55 // pred_fallthru
          _
        %s871 = sand.u32 %s249, 1
        %s872 = scalar_lea.sflag [#allocation5], %s871
        %s873 = sand.u32 %s249, 1
        %s874 = scalar_lea.vmem [#allocation12], %s873
        %s875 = sand.u32 %s275, 1
        %s876 = scalar_lea.sflag [#allocation14], %s875
        %s877 = sand.u32 %s275, 1
        %s878 = scalar_lea.vmem [#allocation13], %s877
        // Predicated region
        $region85: #{tpu_custom_call.1} parent=55 // pred_check
          %p879 = pneg %p259
        $region86: #{tpu_custom_call.1} parent=55 // pred_check_branch
          %881 = sbr.rel (%p879) target = $region88
        $region87: #{tpu_custom_call.1} parent=55 // pred_region
          %883 = vsyncadd %s872, 0
          %s884 = scalar_lea.hbm %s9, %s37
          %s886 = sshll.u32 %s874, 4
          %s887 = int_to_ptr.vmem [resolvable:$true] %s886
          %s888 = sshll.u32 %s884, 4
          %s889 = int_to_ptr.hbm [resolvable:$true] %s888
          %891 = dma.vmem_to_hbm [thread:$0]  %s887, 16, %s889, %s872
        $region88: #{tpu_custom_call.1} parent=55 // pred_fallthru
          _
        // Predicated region
        $region89: #{tpu_custom_call.1} parent=55 // pred_check
          %p892 = pneg %p285
        $region90: #{tpu_custom_call.1} parent=55 // pred_check_branch
          %894 = sbr.rel (%p892) target = $region92
        $region91: #{tpu_custom_call.1} parent=55 // pred_region
          %896 = vsyncadd %s876, 0
          %s897 = scalar_lea.hbm %s10, %s37
          %s899 = sshll.u32 %s878, 4
          %s900 = int_to_ptr.vmem [resolvable:$true] %s899
          %s901 = sshll.u32 %s897, 4
          %s902 = int_to_ptr.hbm [resolvable:$true] %s901
          %904 = dma.vmem_to_hbm [thread:$0]  %s900, 16, %s902, %s876
        $region92: #{tpu_custom_call.1} parent=55 // pred_fallthru
          _
      $region56: #{tpu_custom_call.1} parent=5 // pred_fallthru
        _
      %p905 = scmp.le.s32.totalorder 2, %s28
      // Predicated region
      $region93: #{tpu_custom_call.1} parent=5 // pred_check
        %p906 = pneg %p905
      $region94: #{tpu_custom_call.1} parent=5 // pred_check_branch
        %908 = sbr.rel (%p906) target = $region96
      $region95: #{tpu_custom_call.1} parent=5 // pred_region
        %s909 = ssub.s32 %s28, 2
        // Predicated region
        $region97: #{tpu_custom_call.1} parent=95 // pred_check
          %p910 = pneg %p265
        $region98: #{tpu_custom_call.1} parent=95 // pred_check_branch
          %912 = sbr.rel (%p910) target = $region100
        $region99: #{tpu_custom_call.1} parent=95 // pred_region
          %s913 = sand.u32 %s250, 1
          %s914 = scalar_lea.sflag [#allocation5], %s913
          %s915 = sand.u32 %s250, 1
          %s916 = scalar_lea.vmem [#allocation12], %s915
          %918 = dma.done %s914, 16
        $region100: #{tpu_custom_call.1} parent=95 // pred_fallthru
          _
        // Predicated region
        $region101: #{tpu_custom_call.1} parent=95 // pred_check
          %p919 = pneg %p291
        $region102: #{tpu_custom_call.1} parent=95 // pred_check_branch
          %921 = sbr.rel (%p919) target = $region104
        $region103: #{tpu_custom_call.1} parent=95 // pred_region
          %s922 = sand.u32 %s276, 1
          %s923 = scalar_lea.sflag [#allocation14], %s922
          %s924 = sand.u32 %s276, 1
          %s925 = scalar_lea.vmem [#allocation13], %s924
          %927 = dma.done %s923, 16
        $region104: #{tpu_custom_call.1} parent=95 // pred_fallthru
          _
      $region96: #{tpu_custom_call.1} parent=5 // pred_fallthru
        _
    $region6: #{tpu_custom_call.1} parent=1 // loop_footer
      %s32 = sadd.s32 1, %s28
    $region7: #{tpu_custom_call.1} parent=1 // loop_footer_branch
      %27 = sbr.rel target = $region3
    $region8: #{tpu_custom_call.1} parent=1 // loop_exit
      _
    %928 = vsyncpa [#allocation4], 1
    %s929 = scalar_lea.sflag [#allocation4], 1
    %930 = vsyncpa %s929, 1
    %931 = vsyncpa [#allocation7], 1
    %932 = vsyncpa [#allocation10], 1
    %933 = vsyncpa [#allocation5], 1
    %s934 = scalar_lea.sflag [#allocation5], 1
    %935 = vsyncpa %s934, 1
    %936 = vsyncpa [#allocation14], 1
    %s937 = scalar_lea.sflag [#allocation14], 1
    %938 = vsyncpa %s937, 1

</llo_original>
